<compile_context>
chip_gen: v5e
topology: v5e:2x2
jax: 0.10.0
libtpu: 0.0.40
codegen_flags: <defaults>
</compile_context>

<pallas_src>
import jax
import jax.numpy as jnp
from jax.experimental import pallas as pl
from jax.experimental.pallas import tpu as pltpu


# Total double-buffered VMEM working set (x + out + prompt blocks, padded-row
# accounting, 2 buffers each).  Paired with the explicit limit below this is
# safe on every target chip (v7x has only 64 MiB physical VMEM per TC).
_VMEM_WORKING_SET_BUDGET = 32 * 1024 * 1024
_VMEM_LIMIT_BYTES = 48 * 1024 * 1024


def _sublane_pack(itemsize):
    # Sub-32-bit dtypes pack along sublanes; rows of a VMEM block pad to this.
    return {4: 8, 2: 16, 1: 32}.get(itemsize, 8)


def _round_up(v, m):
    return ((v + m - 1) // m) * m


def _round_down_128(v):
    return (v // 128) * 128


def _add_prompt_kernel(x_ref, p_ref, o_ref):
    # x_ref/o_ref: (B, col_tile); p_ref: (1, col_tile) broadcast over batch.
    # Single lane-dense full-tile VPU add — mem-bound, runs at the DMA roofline.
    o_ref[...] = x_ref[...] + p_ref[...]


def _pick_col_tile(n_cols, n_rows, itemsize):
    """Column-tile width (multiple of 128, or full dim if n_cols <= 128).

    Sized so the double-buffered VMEM footprint of the x, out and prompt
    blocks — with rows padded to the sublane pack — fits the budget, and so
    the grid has at least two steps whenever the column axis allows it (keeps
    both v7x TensorCores streaming; free on single-TC v5e/v6e).
    """
    if n_cols <= 128:
        return n_cols  # block must equal the full array dim below lane width

    pack = _sublane_pack(itemsize)
    padded_rows = _round_up(n_rows, pack)          # x / out block rows in VMEM
    padded_prompt_rows = pack                      # (1, T) prompt block rows
    per_col_bytes = 2 * (2 * padded_rows + padded_prompt_rows) * itemsize

    budget_tile = max(128, _round_down_128(_VMEM_WORKING_SET_BUDGET // per_col_bytes))
    max_tile = max(128, _round_down_128(n_cols))   # never exceed the data
    tile = min(budget_tile, max_tile)

    # Guarantee >= 2 grid steps when possible so the "parallel" axis can split.
    if tile >= n_cols:
        half = max(128, _round_up(pl.cdiv(n_cols, 2), 128))
        tile = half if half < n_cols else max_tile
    return tile


def pad_prompter_forward(x, pad_up, pad_down, pad_left, pad_right, *, donate_x=False):
    """x: (B, C, H, W); pads: (1,C,P,W), (1,C,P,W), (1,C,H-2P,P), (1,C,H-2P,P)."""
    B, C, H, W = x.shape
    P = pad_up.shape[2]
    assert H > 2 * P, "image must be larger than twice the prompt size"
    assert pad_up.shape == (1, C, P, W)
    assert pad_down.shape == (1, C, P, W)
    assert pad_left.shape == (1, C, H - 2 * P, P)
    assert pad_right.shape == (1, C, H - 2 * P, P)

    # torch builds `patch` in the pad-parameter dtype and relies on promotion
    # for x + patch; match that instead of quantizing the prompt to x.dtype.
    out_dt = jnp.promote_types(x.dtype, pad_up.dtype)
    itemsize = jnp.dtype(out_dt).itemsize

    # Assemble the full prompt plane once (constant across batch).
    prompt = jnp.zeros((C, H, W), dtype=out_dt)
    prompt = prompt.at[:, 0:P, :].set(pad_up[0].astype(out_dt))
    prompt = prompt.at[:, H - P:H, :].set(pad_down[0].astype(out_dt))
    prompt = prompt.at[:, P:H - P, 0:P].set(pad_left[0].astype(out_dt))
    prompt = prompt.at[:, P:H - P, W - P:W].set(pad_right[0].astype(out_dt))

    # Lane-dense flattened views.
    N = C * H * W
    x2 = x.astype(out_dt).reshape(B, N)
    p2 = prompt.reshape(1, N)

    # NOTE: for B < sublane pack (e.g. B=2 f32) each vreg row-slot is only
    # partially used; the op is mem-bound so HBM traffic (the true cost) is
    # unaffected, and the padded-row VMEM accounting above keeps it on-budget.
    col_tile = _pick_col_tile(N, B, itemsize)
    grid = (pl.cdiv(N, col_tile),)

    extra = {}
    if donate_x and x.dtype == out_dt:
        extra["input_output_aliases"] = {0: 0}  # write the result in place

    out2 = pl.pallas_call(
        _add_prompt_kernel,
        out_shape=jax.ShapeDtypeStruct((B, N), out_dt),
        grid_spec=pltpu.PrefetchScalarGridSpec(
            num_scalar_prefetch=0,
            grid=grid,
            in_specs=[
                pl.BlockSpec((B, col_tile), lambda j: (0, j)),  # x slab
                pl.BlockSpec((1, col_tile), lambda j: (0, j)),  # prompt slab
            ],
            out_specs=pl.BlockSpec((B, col_tile), lambda j: (0, j)),
        ),
        compiler_params=pltpu.CompilerParams(
            dimension_semantics=("parallel",),
            vmem_limit_bytes=_VMEM_LIMIT_BYTES),
        cost_estimate=pl.CostEstimate(
            flops=B * N,
            transcendentals=0,
            bytes_accessed=(2 * B * N + N) * itemsize),
        **extra,
    )(x2, p2)

    return out2.reshape(B, C, H, W)


def _reference_forward(x, pad_up, pad_down, pad_left, pad_right):
    B, C, H, W = x.shape
    P = pad_up.shape[2]
    dt = jnp.promote_types(x.dtype, pad_up.dtype)
    patch = jnp.zeros((B, C, H, W), dtype=dt)
    patch = patch.at[:, :, 0:P, :].set(pad_up.astype(dt))
    patch = patch.at[:, :, H - P:H, :].set(pad_down.astype(dt))
    patch = patch.at[:, :, P:H - P, 0:P].set(pad_left.astype(dt))
    patch = patch.at[:, :, P:H - P, W - P:W].set(pad_right.astype(dt))
    return x.astype(dt) + patch


if __name__ == "__main__":
    # Module-consistent small shapes: image_size=16, prompt_size=3, 3 channels, batch=2.
    B, C, H = 2, 3, 16
    P = 3
    W = H

    key = jax.random.PRNGKey(0)
    k_x, k_up, k_down, k_left, k_right = jax.random.split(key, 5)

    x = jax.random.normal(k_x, (B, C, H, W), dtype=jnp.float32)
    pad_up = jax.random.normal(k_up, (1, C, P, W), dtype=jnp.float32)
    pad_down = jax.random.normal(k_down, (1, C, P, W), dtype=jnp.float32)
    pad_left = jax.random.normal(k_left, (1, C, H - 2 * P, P), dtype=jnp.float32)
    pad_right = jax.random.normal(k_right, (1, C, H - 2 * P, P), dtype=jnp.float32)

    out = pad_prompter_forward(x, pad_up, pad_down, pad_left, pad_right)
    out = jax.block_until_ready(out)

    ref = _reference_forward(x, pad_up, pad_down, pad_left, pad_right)
    assert out.shape == ref.shape and out.dtype == ref.dtype
    assert jnp.allclose(out, ref, atol=1e-6, rtol=1e-6), "mismatch vs reference"

    print("KERNEL_OK")
</pallas_src>

<mosaic_0001>
module attributes {stable_mosaic.version = 11 : i64} {
  func.func @_add_prompt_kernel(%arg0: i32, %arg1: memref<2x384xf32, #tpu.memory_space<vmem>>, %arg2: memref<1x384xf32, #tpu.memory_space<vmem>>, %arg3: memref<2x384xf32, #tpu.memory_space<vmem>>) attributes {dimension_semantics = [#tpu.dimension_semantics<parallel>], iteration_bounds = array<i64: 2>, scalar_prefetch = 0 : i64, scratch_operands = 0 : i64, tpu.core_type = #tpu.core_type<tc>, window_params = [{transform_indices = @transform_0, window_bounds = array<i64: 2, 384>}, {transform_indices = @transform_1, window_bounds = array<i64: 1, 384>}, {transform_indices = @transform_2, window_bounds = array<i64: 2, 384>}]} {
    %c0 = arith.constant 0 : index
    %c0_0 = arith.constant 0 : index
    %0 = vector.load %arg1[%c0, %c0_0] : memref<2x384xf32, #tpu.memory_space<vmem>>, vector<2x384xf32>
    %c0_1 = arith.constant 0 : index
    %c0_2 = arith.constant 0 : index
    %1 = vector.load %arg2[%c0_1, %c0_2] : memref<1x384xf32, #tpu.memory_space<vmem>>, vector<1x384xf32>
    %2 = vector.broadcast %1 : vector<1x384xf32> to vector<2x384xf32>
    %3 = arith.addf %0, %2 : vector<2x384xf32>
    %c0_3 = arith.constant 0 : index
    %c0_4 = arith.constant 0 : index
    %4 = vector.load %arg3[%c0_3, %c0_4] : memref<2x384xf32, #tpu.memory_space<vmem>>, vector<2x384xf32>
    tpu.vector_store %arg3[%c0_3, %c0_4], %3 {strides = array<i32>} : memref<2x384xf32, #tpu.memory_space<vmem>>, vector<2x384xf32>,
    return
  }
  func.func @transform_0(%arg0: i32) -> (i32, i32) {
    %c0_i32 = arith.constant 0 : i32
    %c0_i32_0 = arith.constant 0 : i32
    return %c0_i32, %arg0 : i32, i32
  }
  func.func @transform_1(%arg0: i32) -> (i32, i32) {
    %c0_i32 = arith.constant 0 : i32
    %c0_i32_0 = arith.constant 0 : i32
    return %c0_i32, %arg0 : i32, i32
  }
  func.func @transform_2(%arg0: i32) -> (i32, i32) {
    %c0_i32 = arith.constant 0 : i32
    %c0_i32_0 = arith.constant 0 : i32
    return %c0_i32, %arg0 : i32, i32
  }
}

</mosaic_0001>

<llo_original>
// kernel: tpu_custom_call.1
$region0: #{tpu_custom_call.1}
  #allocation0 [shape = 'u32[]', space=smem, size = 0x4, offset = 0x4, fixed_abs, tag = 'smem constant byte address 0x4 - core index']
  #allocation1 [shape = 'u32[72,128]{1,0:T(1,128)}', space=vmem, size = 0x9000, scoped, tag = 'internal scratch']
  %s0 = inlined_call_operand.hbm [shape: f32[2,768], index: 0, kind: input, shape index: {}]
  %s1 = inlined_call_operand.hbm [shape: f32[1,768], index: 1, kind: input, shape index: {}]
  %s2 = inlined_call_operand.hbm [shape: f32[2,768], index: 2, kind: output, shape index: {}]
  %s3 = sld [smem:[#allocation0]]
  $region49: #{tpu_custom_call.1} parent=0
    _
  %s5 = ssub.s32 1, %s3
  %s6 = scalar_select 0, %s5, %s3
  $region1: #{tpu_custom_call.1} parent=0
    #allocation2 [shape = 'u8[6144]{0}', space=vmem, size = 0x1800, scoped, tag = 'input window, operand 0']
    #allocation3 [shape = 's32[2]{0}', space=sflag, size = 0x8, scoped, tag = 'scoped memory for tpu_custom_call.1']
    #allocation4 [shape = 's32[2]{0}', space=sflag, size = 0x8, scoped, tag = 'scoped memory for tpu_custom_call.1']
    #allocation5 [shape = 'u8[3072]{0}', space=vmem, size = 0xc00, scoped, tag = 'input window, operand 1']
    #allocation6 [shape = 's32[2]{0}', space=sflag, size = 0x8, scoped, tag = 'scoped memory for tpu_custom_call.1']
    #allocation7 [shape = 'u8[6144]{0}', space=vmem, size = 0x1800, scoped, tag = 'output window, operand 0']
    %7 = vsyncpa [#allocation3], 0
    %s8 = scalar_lea.sflag [#allocation3], 1
    %9 = vsyncpa %s8, 0
    %10 = vsyncpa [#allocation6], 0
    %s11 = scalar_lea.sflag [#allocation6], 1
    %12 = vsyncpa %s11, 0
    %13 = vsyncpa [#allocation4], 0
    %s14 = scalar_lea.sflag [#allocation4], 1
    %15 = vsyncpa %s14, 0
    loop: start=0, step=1, limit=4
    $region2: #{tpu_custom_call.1} parent=1 // loop_pre_header
      _
    $region3: #{tpu_custom_call.1} parent=1 // loop_header
      %s17 = sphi 0, %s21
      %p18 = scmp.ge.s32.totalorder %s17, 4
      %s27 = sphi 0, %s29
      %s30 = sphi 0, %s27
      %s31 = sphi 0, %s30
      %s47 = sphi 0, %s31
      %s53 = sphi 0, %s55
      %s56 = sphi 0, %s53
      %s57 = sphi 0, %s56
      %s73 = sphi 0, %s57
      %s79 = sphi 0, %s81
      %s82 = sphi 0, %s79
      %s83 = sphi 0, %s82
      %s99 = sphi 0, %s83
    $region4: #{tpu_custom_call.1} parent=1 // loop_header_branch
      %20 = sbr.rel (%p18) target = $region8
    $region5: #{tpu_custom_call.1} parent=1 // loop_body
      %s22 = ssub.s32 %s17, 1
      %s23 = ssub.s32 %s17, 2
      %s24 = sadd.s32 %s17, 1
      %s25 = ssub.s32 %s17, %s24
      %p26 = scmp.eq.s32.totalorder %s25, 0
      %s28 = sadd.s32 %s27, 1
      %s29 = scalar_select %p26, %s27, %s28
      %p32 = pneg %p26
      %p33 = scmp.eq.s32.totalorder %s17, 1
      %p34 = por %p32, %p33
      %p35 = scmp.ne.s32.totalorder %s27, %s30
      %p36 = scmp.eq.s32.totalorder %s17, 0
      %p37 = por %p35, %p36
      %p38 = scmp.ne.s32.totalorder %s27, %s30
      %p39 = scmp.eq.s32.totalorder %s22, 1
      %p40 = por %p38, %p39
      %p41 = scmp.ne.s32.totalorder %s30, %s31
      %p42 = scmp.eq.s32.totalorder %s22, 0
      %p43 = por %p41, %p42
      %p44 = scmp.ne.s32.totalorder %s30, %s31
      %p45 = scmp.eq.s32.totalorder %s23, 1
      %p46 = por %p44, %p45
      %p48 = scmp.ne.s32.totalorder %s31, %s47
      %p49 = scmp.eq.s32.totalorder %s23, 0
      %p50 = por %p48, %p49
      %s51 = ssub.s32 %s17, %s24
      %p52 = scmp.eq.s32.totalorder %s51, 0
      %s54 = sadd.s32 %s53, 1
      %s55 = scalar_select %p52, %s53, %s54
      %p58 = pneg %p52
      %p59 = scmp.eq.s32.totalorder %s17, 1
      %p60 = por %p58, %p59
      %p61 = scmp.ne.s32.totalorder %s53, %s56
      %p62 = scmp.eq.s32.totalorder %s17, 0
      %p63 = por %p61, %p62
      %p64 = scmp.ne.s32.totalorder %s53, %s56
      %p65 = scmp.eq.s32.totalorder %s22, 1
      %p66 = por %p64, %p65
      %p67 = scmp.ne.s32.totalorder %s56, %s57
      %p68 = scmp.eq.s32.totalorder %s22, 0
      %p69 = por %p67, %p68
      %p70 = scmp.ne.s32.totalorder %s56, %s57
      %p71 = scmp.eq.s32.totalorder %s23, 1
      %p72 = por %p70, %p71
      %p74 = scmp.ne.s32.totalorder %s57, %s73
      %p75 = scmp.eq.s32.totalorder %s23, 0
      %p76 = por %p74, %p75
      %s77 = ssub.s32 %s17, %s24
      %p78 = scmp.eq.s32.totalorder %s77, 0
      %s80 = sadd.s32 %s79, 1
      %s81 = scalar_select %p78, %s79, %s80
      %p84 = pneg %p78
      %p85 = scmp.eq.s32.totalorder %s17, 1
      %p86 = por %p84, %p85
      %p87 = scmp.ne.s32.totalorder %s79, %s82
      %p88 = scmp.eq.s32.totalorder %s17, 0
      %p89 = por %p87, %p88
      %p90 = scmp.ne.s32.totalorder %s79, %s82
      %p91 = scmp.eq.s32.totalorder %s22, 1
      %p92 = por %p90, %p91
      %p93 = scmp.ne.s32.totalorder %s82, %s83
      %p94 = scmp.eq.s32.totalorder %s22, 0
      %p95 = por %p93, %p94
      %p96 = scmp.ne.s32.totalorder %s82, %s83
      %p97 = scmp.eq.s32.totalorder %s23, 1
      %p98 = por %p96, %p97
      %p100 = scmp.ne.s32.totalorder %s83, %s99
      %p101 = scmp.eq.s32.totalorder %s23, 0
      %p102 = por %p100, %p101
      %p103 = scmp.le.s32.totalorder 1, %s17
      %p104 = scmp.lt.s32.totalorder %s17, 3
      %p105 = pnand %p103, %p104
      %p106 = pneg %p105
      // Predicated region
      $region9: #{tpu_custom_call.1} parent=5 // pred_check
        _
      $region10: #{tpu_custom_call.1} parent=5 // pred_check_branch
        %108 = sbr.rel (%p105) target = $region12
      $region11: #{tpu_custom_call.1} parent=5 // pred_region
        %s109 = ssub.s32 %s17, 1
      $region12: #{tpu_custom_call.1} parent=5 // pred_fallthru
        _
      %p110 = scmp.lt.s32.totalorder %s17, 2
      // Predicated region
      $region13: #{tpu_custom_call.1} parent=5 // pred_check
        %p111 = pneg %p110
      $region14: #{tpu_custom_call.1} parent=5 // pred_check_branch
        %113 = sbr.rel (%p111) target = $region16
      $region15: #{tpu_custom_call.1} parent=5 // pred_region
        // Predicated region
        $region17: #{tpu_custom_call.1} parent=15 // pred_check
          %p114 = pneg %p37
        $region18: #{tpu_custom_call.1} parent=15 // pred_check_branch
          %116 = sbr.rel (%p114) target = $region20
        $region19: #{tpu_custom_call.1} parent=15 // pred_region
          %s117 = sand.u32 %s27, 1
          %s118 = scalar_lea.sflag [#allocation3], %s117
          %s119 = sand.u32 %s27, 1
          %s120 = smul.addr %s119, 6
          %s121 = scalar_lea.vmem [#allocation2], %s120
          %s122 = smul.u32 3, %s17
          %124 = vsyncadd %s118, 0
          %s125 = smul.addr %s122, 2
          %s126 = scalar_lea.hbm %s0, %s125
          %s128 = sshll.u32 %s126, 4
          %s129 = int_to_ptr.hbm [resolvable:$true] %s128
          %s130 = sshll.u32 %s121, 4
          %s131 = int_to_ptr.vmem [resolvable:$true] %s130
          %133 = dma.hbm_to_vmem [thread:$0]  %s129, 96, %s131, %s118
        $region20: #{tpu_custom_call.1} parent=15 // pred_fallthru
          _
        // Predicated region
        $region21: #{tpu_custom_call.1} parent=15 // pred_check
          %p134 = pneg %p63
        $region22: #{tpu_custom_call.1} parent=15 // pred_check_branch
          %136 = sbr.rel (%p134) target = $region24
        $region23: #{tpu_custom_call.1} parent=15 // pred_region
          %s137 = sand.u32 %s53, 1
          %s138 = scalar_lea.sflag [#allocation6], %s137
          %s139 = sand.u32 %s53, 1
          %s140 = smul.addr %s139, 3
          %s141 = scalar_lea.vmem [#allocation5], %s140
          %s142 = smul.u32 3, %s17
          %144 = vsyncadd %s138, 0
          %s145 = scalar_lea.hbm %s1, %s142
          %s147 = sshll.u32 %s145, 4
          %s148 = int_to_ptr.hbm [resolvable:$true] %s147
          %s149 = sshll.u32 %s141, 4
          %s150 = int_to_ptr.vmem [resolvable:$true] %s149
          %152 = dma.hbm_to_vmem [thread:$0]  %s148, 48, %s150, %s138
        $region24: #{tpu_custom_call.1} parent=15 // pred_fallthru
          _
      $region16: #{tpu_custom_call.1} parent=5 // pred_fallthru
        _
      %p153 = scmp.le.s32.totalorder 1, %s17
      %p154 = scmp.lt.s32.totalorder %s17, 3
      %p155 = pnand %p153, %p154
      %p156 = pneg %p155
      // Predicated region
      $region25: #{tpu_custom_call.1} parent=5 // pred_check
        _
      $region26: #{tpu_custom_call.1} parent=5 // pred_check_branch
        %158 = sbr.rel (%p155) target = $region28
      $region27: #{tpu_custom_call.1} parent=5 // pred_region
        %s159 = ssub.s32 %s17, 1
        %s160 = sand.u32 %s30, 1
        %s161 = scalar_lea.sflag [#allocation3], %s160
        %s162 = sand.u32 %s30, 1
        %s163 = smul.addr %s162, 6
        %s164 = scalar_lea.vmem [#allocation2], %s163
        // Predicated region
        $region29: #{tpu_custom_call.1} parent=27 // pred_check
          %p165 = pneg %p43
        $region30: #{tpu_custom_call.1} parent=27 // pred_check_branch
          %167 = sbr.rel (%p165) target = $region32
        $region31: #{tpu_custom_call.1} parent=27 // pred_region
          %169 = dma.done %s161, 96
        $region32: #{tpu_custom_call.1} parent=27 // pred_fallthru
          _
        %s170 = sand.u32 %s56, 1
        %s171 = scalar_lea.sflag [#allocation6], %s170
        %s172 = sand.u32 %s56, 1
        %s173 = smul.addr %s172, 3
        %s174 = scalar_lea.vmem [#allocation5], %s173
        // Predicated region
        $region33: #{tpu_custom_call.1} parent=27 // pred_check
          %p175 = pneg %p69
        $region34: #{tpu_custom_call.1} parent=27 // pred_check_branch
          %177 = sbr.rel (%p175) target = $region36
        $region35: #{tpu_custom_call.1} parent=27 // pred_region
          %179 = dma.done %s171, 48
        $region36: #{tpu_custom_call.1} parent=27 // pred_fallthru
          _
        %s180 = sand.u32 %s30, 1
        %s181 = scalar_lea.sflag [#allocation3], %s180
        %s182 = sand.u32 %s30, 1
        %s183 = smul.addr %s182, 6
        %s184 = scalar_lea.vmem [#allocation2], %s183
        %p185 = pneg %p43
        %p186 = pneg %p40
        %s187 = sand.u32 %s56, 1
        %s188 = scalar_lea.sflag [#allocation6], %s187
        %s189 = sand.u32 %s56, 1
        %s190 = smul.addr %s189, 3
        %s191 = scalar_lea.vmem [#allocation5], %s190
        %p192 = pneg %p69
        %p193 = pneg %p66
        %p194 = pneg %p95
        %p195 = pneg %p92
        %s196 = sand.u32 %s82, 1
        %s197 = scalar_lea.sflag [#allocation4], %s196
        %s198 = sand.u32 %s82, 1
        %s199 = smul.addr %s198, 6
        %s200 = scalar_lea.vmem [#allocation7], %s199
        %s201 = smul.u32 3, %s22
        %s202 = smul.u32 3, %s22
        %s203 = smul.u32 3, %s22
        %v204 = vld [vmem:[%s164] sm:$0x3f]
        %v205 = vld [vmem:[%s174] sm:$0x7]
        %v207 = vperm.slane %v205, 0
        %v208 = vperm.slane %v205, 1
        %v209 = vperm.slane %v205, 2
        %v210 = vrot.slane %v208, 6
        %v211 = vrot.slane %v209, 4
        %vm212 = vcmask 1041408
        %v213 = vsel %vm212, %v207, %v210
        %vm214 = vcmask 1043456
        %v215 = vsel %vm214, %v213, %v211
        %v217 = vadd.f32 %v204, %v215
        %218 = vst [vmem:[%s200] sm:$0x3f] %v217
        %s219 = sand.u32 %s82, 1
        %s220 = scalar_lea.sflag [#allocation4], %s219
        %s221 = sand.u32 %s82, 1
        %s222 = smul.addr %s221, 6
        %s223 = scalar_lea.vmem [#allocation7], %s222
        // Predicated region
        $region37: #{tpu_custom_call.1} parent=27 // pred_check
          %p224 = pneg %p92
        $region38: #{tpu_custom_call.1} parent=27 // pred_check_branch
          %226 = sbr.rel (%p224) target = $region40
        $region39: #{tpu_custom_call.1} parent=27 // pred_region
          %s227 = smul.u32 3, %s22
          %229 = vsyncadd %s220, 0
          %s230 = smul.addr %s227, 2
          %s231 = scalar_lea.hbm %s2, %s230
          %s233 = sshll.u32 %s223, 4
          %s234 = int_to_ptr.vmem [resolvable:$true] %s233
          %s235 = sshll.u32 %s231, 4
          %s236 = int_to_ptr.hbm [resolvable:$true] %s235
          %238 = dma.vmem_to_hbm [thread:$0]  %s234, 96, %s236, %s220
        $region40: #{tpu_custom_call.1} parent=27 // pred_fallthru
          _
      $region28: #{tpu_custom_call.1} parent=5 // pred_fallthru
        _
      %p239 = scmp.le.s32.totalorder 2, %s17
      // Predicated region
      $region41: #{tpu_custom_call.1} parent=5 // pred_check
        %p240 = pneg %p239
      $region42: #{tpu_custom_call.1} parent=5 // pred_check_branch
        %242 = sbr.rel (%p240) target = $region44
      $region43: #{tpu_custom_call.1} parent=5 // pred_region
        %s243 = ssub.s32 %s17, 2
        // Predicated region
        $region45: #{tpu_custom_call.1} parent=43 // pred_check
          %p244 = pneg %p98
        $region46: #{tpu_custom_call.1} parent=43 // pred_check_branch
          %246 = sbr.rel (%p244) target = $region48
        $region47: #{tpu_custom_call.1} parent=43 // pred_region
          %s247 = sand.u32 %s83, 1
          %s248 = scalar_lea.sflag [#allocation4], %s247
          %s249 = sand.u32 %s83, 1
          %s250 = smul.addr %s249, 6
          %s251 = scalar_lea.vmem [#allocation7], %s250
          %253 = dma.done %s248, 96
        $region48: #{tpu_custom_call.1} parent=43 // pred_fallthru
          _
      $region44: #{tpu_custom_call.1} parent=5 // pred_fallthru
        _
    $region6: #{tpu_custom_call.1} parent=1 // loop_footer
      %s21 = sadd.s32 1, %s17
    $region7: #{tpu_custom_call.1} parent=1 // loop_footer_branch
      %16 = sbr.rel target = $region3
    $region8: #{tpu_custom_call.1} parent=1 // loop_exit
      _
    %254 = vsyncpa [#allocation3], 1
    %s255 = scalar_lea.sflag [#allocation3], 1
    %256 = vsyncpa %s255, 1
    %257 = vsyncpa [#allocation6], 1
    %s258 = scalar_lea.sflag [#allocation6], 1
    %259 = vsyncpa %s258, 1
    %260 = vsyncpa [#allocation4], 1
    %s261 = scalar_lea.sflag [#allocation4], 1
    %262 = vsyncpa %s261, 1

</llo_original>
